<compile_context>
chip_gen: v7x
topology: tpu7x:2x2x1
jax: 0.10.0
libtpu: 0.0.40
codegen_flags: <defaults>
</compile_context>

<pallas_src>
import math

import jax
import jax.numpy as jnp
from jax import lax
from jax.experimental import pallas as pl
from jax.experimental.pallas import tpu as pltpu

_INV_SQRT2 = 1.0 / math.sqrt(2.0)


def _gelu_exact(x):
    # nn.GELU() default = exact erf formulation.
    return 0.5 * x * (1.0 + lax.erf(x * _INV_SQRT2))


def _mlp_kernel(x_ref, w1_ref, b1_ref, w2_ref, b2_ref, w3_ref, b3_ref, o_ref):
    cdt = w1_ref.dtype  # MXU input dtype (bf16 or f32); accumulation is f32.
    # In-kernel cast of the x tile (VPU work hidden under the MXU cadence).
    x = x_ref[...].astype(cdt)
    # Layer 1: Linear + GELU   (Dropout = identity at eval)
    h = jnp.dot(x, w1_ref[...], preferred_element_type=jnp.float32)
    h = _gelu_exact(h + b1_ref[...])
    # Layer 2: Linear + GELU
    h = jnp.dot(h.astype(cdt), w2_ref[...], preferred_element_type=jnp.float32)
    h = _gelu_exact(h + b2_ref[...])
    # Output layer: Linear
    y = jnp.dot(h.astype(cdt), w3_ref[...], preferred_element_type=jnp.float32)
    o_ref[...] = (y + b3_ref[...]).astype(o_ref.dtype)


def _round_up(n, m):
    return ((n + m - 1) // m) * m


def _choose_batch_tile(B, batch_tile):
    """Pick the batch tile size.

    * Tiny batches (<=128 rows): one tile, rounded up to 8 sublanes — splitting
      just adds per-step overhead.
    * Otherwise: at least 2 grid steps (so v7x can shard the 'parallel' batch
      axis across both TensorCores), capped at batch_tile (default 2048) to
      keep per-grid-step overhead ~5% while staying far under VMEM limits
      (weights <12 KiB; x/out/intermediates at tb=2048 are ~2 MiB live).
    """
    if B <= 128:
        return max(8, _round_up(B, 8))
    return max(8, min(batch_tile, _round_up(pl.cdiv(B, 2), 8)))


def custom_mlp_forward(x, params, *, compute_dtype=jnp.bfloat16, batch_tile=2048):
    """x: (B, input_dim).  params: dict of transposed weights + (1, out) biases."""
    w1, b1, w2, b2, w3, b3 = (
        params["w1"], params["b1"],
        params["w2"], params["b2"],
        params["w3"], params["b3"],
    )
    B, in_dim = x.shape
    h1, h2, out_dim = w1.shape[1], w2.shape[1], w3.shape[1]

    tb = _choose_batch_tile(B, batch_tile)
    b_pad = _round_up(B, tb)
    x_p = x if b_pad == B else jnp.pad(x, ((0, b_pad - B), (0, 0)))

    # One-time weight casts to the MXU input dtype (tiny).  x stays in its
    # input dtype and is cast inside the kernel (no extra HBM pass / launch).
    w1c = w1.astype(compute_dtype)
    w2c = w2.astype(compute_dtype)
    w3c = w3.astype(compute_dtype)

    grid = (pl.cdiv(b_pad, tb),)
    flops = 2 * b_pad * (in_dim * h1 + h1 * h2 + h2 * out_dim)
    bytes_accessed = int(
        x_p.size * x_p.dtype.itemsize
        + sum(a.size * a.dtype.itemsize for a in (w1c, w2c, w3c, b1, b2, b3))
        + b_pad * out_dim * jnp.dtype(x.dtype).itemsize
    )

    out = pl.pallas_call(
        _mlp_kernel,
        out_shape=jax.ShapeDtypeStruct((b_pad, out_dim), x.dtype),
        grid_spec=pltpu.PrefetchScalarGridSpec(
            num_scalar_prefetch=0,
            grid=grid,
            in_specs=[
                pl.BlockSpec((tb, in_dim), lambda i: (i, 0)),     # x: batch-tiled
                pl.BlockSpec((in_dim, h1), lambda i: (0, 0)),     # W1 resident
                pl.BlockSpec((1, h1), lambda i: (0, 0)),          # b1 resident
                pl.BlockSpec((h1, h2), lambda i: (0, 0)),         # W2 resident
                pl.BlockSpec((1, h2), lambda i: (0, 0)),          # b2 resident
                pl.BlockSpec((h2, out_dim), lambda i: (0, 0)),    # W3 resident
                pl.BlockSpec((1, out_dim), lambda i: (0, 0)),     # b3 resident
            ],
            out_specs=pl.BlockSpec((tb, out_dim), lambda i: (i, 0)),
        ),
        compiler_params=pltpu.CompilerParams(
            dimension_semantics=("parallel",),  # megacore sharding on v7x
        ),
        cost_estimate=pl.CostEstimate(
            flops=flops,
            transcendentals=0,  # erf is a VALU polynomial on TPU, not EUP work
            bytes_accessed=bytes_accessed,
        ),
    )(x_p, w1c, b1, w2c, b2, w3c, b3)

    return out[:B] if b_pad != B else out


def init_params(key, input_dim, hidden_dims, output_dim):
    """Deterministic init mimicking nn.Linear default (uniform +/- 1/sqrt(fan_in)).

    Weights are stored as (in, out) = PyTorch weight.T for direct x @ W.
    Biases are stored as (1, out) so they broadcast over the batch tile.
    """
    params = {}
    dims = [input_dim] + list(hidden_dims) + [output_dim]
    for i in range(len(dims) - 1):
        fan_in, fan_out = dims[i], dims[i + 1]
        key, kw, kb = jax.random.split(key, 3)
        bound = 1.0 / math.sqrt(fan_in)
        params[f"w{i + 1}"] = jax.random.uniform(
            kw, (fan_in, fan_out), jnp.float32, -bound, bound)
        params[f"b{i + 1}"] = jax.random.uniform(
            kb, (1, fan_out), jnp.float32, -bound, bound)
    return params


def reference_forward(x, params, compute_dtype=jnp.float32):
    """Pure-JAX reference. compute_dtype mimics the kernel's MXU input dtype."""
    def dot(a, w):
        return jnp.dot(a.astype(compute_dtype), w.astype(compute_dtype),
                       preferred_element_type=jnp.float32)

    h = _gelu_exact(dot(x, params["w1"]) + params["b1"])
    h = _gelu_exact(dot(h, params["w2"]) + params["b2"])
    return (dot(h, params["w3"]) + params["b3"]).astype(x.dtype)


if __name__ == "__main__":
    # Small shapes consistent with the module: CustomMLP(32, [64, 48], 16)
    batch, input_dim, hidden_dims, output_dim = 8, 32, (64, 48), 16

    key = jax.random.PRNGKey(0)
    key, kx = jax.random.split(key)
    x = jax.random.normal(kx, (batch, input_dim), dtype=jnp.float32)
    params = init_params(key, input_dim, hidden_dims, output_dim)

    # 1) f32 compute path: tight check against the pure-f32 reference.
    out_f32 = jax.block_until_ready(
        custom_mlp_forward(x, params, compute_dtype=jnp.float32))
    ref_f32 = reference_forward(x, params, compute_dtype=jnp.float32)
    assert out_f32.shape == (batch, output_dim), out_f32.shape
    assert jnp.allclose(out_f32, ref_f32, atol=1e-5, rtol=1e-5), float(
        jnp.max(jnp.abs(out_f32 - ref_f32)))

    # 2) Default bf16-MXU path: check against a reference with the same
    #    bf16-in / f32-accumulate recipe (small tolerance for accum-order diffs).
    out_bf16 = jax.block_until_ready(custom_mlp_forward(x, params))
    ref_bf16 = reference_forward(x, params, compute_dtype=jnp.bfloat16)
    assert jnp.allclose(out_bf16, ref_bf16, atol=2e-3, rtol=2e-3), float(
        jnp.max(jnp.abs(out_bf16 - ref_bf16)))

    # 3) Multi-step grid + batch padding path: B=600 splits into >=2 tiles
    #    (>=2 steps keeps both v7x TensorCores busy via the 'parallel' axis).
    key, kx2 = jax.random.split(key)
    x_big = jax.random.normal(kx2, (600, input_dim), dtype=jnp.float32)
    out_big = jax.block_until_ready(custom_mlp_forward(x_big, params))
    ref_big = reference_forward(x_big, params, compute_dtype=jnp.bfloat16)
    assert out_big.shape == (600, output_dim), out_big.shape
    assert jnp.allclose(out_big, ref_big, atol=2e-3, rtol=2e-3), float(
        jnp.max(jnp.abs(out_big - ref_big)))

    # 4) Explicit small batch_tile override still works (grid=(3,), pad 600->768).
    out_small_tile = jax.block_until_ready(
        custom_mlp_forward(x_big, params, batch_tile=256))
    assert out_small_tile.shape == (600, output_dim), out_small_tile.shape
    assert jnp.allclose(out_small_tile, ref_big, atol=2e-3, rtol=2e-3), float(
        jnp.max(jnp.abs(out_small_tile - ref_big)))

    print("KERNEL_OK")
</pallas_src>

<mosaic_0001>
module attributes {stable_mosaic.version = 11 : i64} {
  func.func @_mlp_kernel(%arg0: i32, %arg1: memref<8x32xf32, #tpu.memory_space<vmem>>, %arg2: memref<32x64xf32, #tpu.memory_space<vmem>>, %arg3: memref<1x64xf32, #tpu.memory_space<vmem>>, %arg4: memref<64x48xf32, #tpu.memory_space<vmem>>, %arg5: memref<1x48xf32, #tpu.memory_space<vmem>>, %arg6: memref<48x16xf32, #tpu.memory_space<vmem>>, %arg7: memref<1x16xf32, #tpu.memory_space<vmem>>, %arg8: memref<8x16xf32, #tpu.memory_space<vmem>>) attributes {dimension_semantics = [#tpu.dimension_semantics<parallel>], iteration_bounds = array<i64: 1>, scalar_prefetch = 0 : i64, scratch_operands = 0 : i64, tpu.core_type = #tpu.core_type<tc>, window_params = [{transform_indices = @transform_0, window_bounds = array<i64: 8, 32>}, {pipeline_mode = #tpu.pipeline_mode<synchronous>, transform_indices = @transform_1, window_bounds = array<i64: 32, 64>}, {pipeline_mode = #tpu.pipeline_mode<synchronous>, transform_indices = @transform_2, window_bounds = array<i64: 1, 64>}, {pipeline_mode = #tpu.pipeline_mode<synchronous>, transform_indices = @transform_3, window_bounds = array<i64: 64, 48>}, {pipeline_mode = #tpu.pipeline_mode<synchronous>, transform_indices = @transform_4, window_bounds = array<i64: 1, 48>}, {pipeline_mode = #tpu.pipeline_mode<synchronous>, transform_indices = @transform_5, window_bounds = array<i64: 48, 16>}, {pipeline_mode = #tpu.pipeline_mode<synchronous>, transform_indices = @transform_6, window_bounds = array<i64: 1, 16>}, {transform_indices = @transform_7, window_bounds = array<i64: 8, 16>}]} {
    %c0 = arith.constant 0 : index
    %c0_0 = arith.constant 0 : index
    %0 = vector.load %arg1[%c0, %c0_0] : memref<8x32xf32, #tpu.memory_space<vmem>>, vector<8x32xf32>
    %c0_1 = arith.constant 0 : index
    %c0_2 = arith.constant 0 : index
    %1 = vector.load %arg2[%c0_1, %c0_2] : memref<32x64xf32, #tpu.memory_space<vmem>>, vector<32x64xf32>
    %cst = arith.constant dense<0.000000e+00> : vector<8x64xf32>
    %2 = tpu.matmul %0, %1, %cst {dimension_numbers = #tpu.dot_dimension_numbers<[1], [0], [0], [1], [0, 0, 1, 1], [], []>} : vector<8x32xf32>, vector<32x64xf32>, vector<8x64xf32> -> vector<8x64xf32>
    %c0_3 = arith.constant 0 : index
    %c0_4 = arith.constant 0 : index
    %3 = vector.load %arg3[%c0_3, %c0_4] : memref<1x64xf32, #tpu.memory_space<vmem>>, vector<1x64xf32>
    %4 = vector.broadcast %3 : vector<1x64xf32> to vector<8x64xf32>
    %5 = arith.addf %2, %4 : vector<8x64xf32>
    %cst_5 = arith.constant 5.000000e-01 : f32
    %6 = vector.broadcast %cst_5 : f32 to vector<8x64xf32>
    %7 = arith.mulf %6, %5 : vector<8x64xf32>
    %cst_6 = arith.constant 0.707106769 : f32
    %8 = vector.broadcast %cst_6 : f32 to vector<8x64xf32>
    %9 = arith.mulf %5, %8 : vector<8x64xf32>
    %10 = math.erf %9 : vector<8x64xf32>
    %cst_7 = arith.constant 1.000000e+00 : f32
    %11 = vector.broadcast %cst_7 : f32 to vector<8x64xf32>
    %12 = arith.addf %11, %10 : vector<8x64xf32>
    %13 = arith.mulf %7, %12 : vector<8x64xf32>
    %c0_8 = arith.constant 0 : index
    %c0_9 = arith.constant 0 : index
    %14 = vector.load %arg4[%c0_8, %c0_9] : memref<64x48xf32, #tpu.memory_space<vmem>>, vector<64x48xf32>
    %cst_10 = arith.constant dense<0.000000e+00> : vector<8x48xf32>
    %15 = tpu.matmul %13, %14, %cst_10 {dimension_numbers = #tpu.dot_dimension_numbers<[1], [0], [0], [1], [0, 0, 1, 1], [], []>} : vector<8x64xf32>, vector<64x48xf32>, vector<8x48xf32> -> vector<8x48xf32>
    %c0_11 = arith.constant 0 : index
    %c0_12 = arith.constant 0 : index
    %16 = vector.load %arg5[%c0_11, %c0_12] : memref<1x48xf32, #tpu.memory_space<vmem>>, vector<1x48xf32>
    %17 = vector.broadcast %16 : vector<1x48xf32> to vector<8x48xf32>
    %18 = arith.addf %15, %17 : vector<8x48xf32>
    %cst_13 = arith.constant 5.000000e-01 : f32
    %19 = vector.broadcast %cst_13 : f32 to vector<8x48xf32>
    %20 = arith.mulf %19, %18 : vector<8x48xf32>
    %cst_14 = arith.constant 0.707106769 : f32
    %21 = vector.broadcast %cst_14 : f32 to vector<8x48xf32>
    %22 = arith.mulf %18, %21 : vector<8x48xf32>
    %23 = math.erf %22 : vector<8x48xf32>
    %cst_15 = arith.constant 1.000000e+00 : f32
    %24 = vector.broadcast %cst_15 : f32 to vector<8x48xf32>
    %25 = arith.addf %24, %23 : vector<8x48xf32>
    %26 = arith.mulf %20, %25 : vector<8x48xf32>
    %c0_16 = arith.constant 0 : index
    %c0_17 = arith.constant 0 : index
    %27 = vector.load %arg6[%c0_16, %c0_17] : memref<48x16xf32, #tpu.memory_space<vmem>>, vector<48x16xf32>
    %cst_18 = arith.constant dense<0.000000e+00> : vector<8x16xf32>
    %28 = tpu.matmul %26, %27, %cst_18 {dimension_numbers = #tpu.dot_dimension_numbers<[1], [0], [0], [1], [0, 0, 1, 1], [], []>} : vector<8x48xf32>, vector<48x16xf32>, vector<8x16xf32> -> vector<8x16xf32>
    %c0_19 = arith.constant 0 : index
    %c0_20 = arith.constant 0 : index
    %29 = vector.load %arg7[%c0_19, %c0_20] : memref<1x16xf32, #tpu.memory_space<vmem>>, vector<1x16xf32>
    %30 = vector.broadcast %29 : vector<1x16xf32> to vector<8x16xf32>
    %31 = arith.addf %28, %30 : vector<8x16xf32>
    %c0_21 = arith.constant 0 : index
    %c0_22 = arith.constant 0 : index
    %32 = vector.load %arg8[%c0_21, %c0_22] : memref<8x16xf32, #tpu.memory_space<vmem>>, vector<8x16xf32>
    tpu.vector_store %arg8[%c0_21, %c0_22], %31 {strides = array<i32>} : memref<8x16xf32, #tpu.memory_space<vmem>>, vector<8x16xf32>,
    return
  }
  func.func @transform_0(%arg0: i32) -> (i32, i32) {
    %c0_i32 = arith.constant 0 : i32
    %c0_i32_0 = arith.constant 0 : i32
    return %arg0, %c0_i32 : i32, i32
  }
  func.func @transform_1(%arg0: i32) -> (i32, i32) {
    %c0_i32 = arith.constant 0 : i32
    %c0_i32_0 = arith.constant 0 : i32
    %c0_i32_1 = arith.constant 0 : i32
    return %c0_i32, %c0_i32_0 : i32, i32
  }
  func.func @transform_2(%arg0: i32) -> (i32, i32) {
    %c0_i32 = arith.constant 0 : i32
    %c0_i32_0 = arith.constant 0 : i32
    %c0_i32_1 = arith.constant 0 : i32
    return %c0_i32, %c0_i32_0 : i32, i32
  }
  func.func @transform_3(%arg0: i32) -> (i32, i32) {
    %c0_i32 = arith.constant 0 : i32
    %c0_i32_0 = arith.constant 0 : i32
    %c0_i32_1 = arith.constant 0 : i32
    return %c0_i32, %c0_i32_0 : i32, i32
  }
  func.func @transform_4(%arg0: i32) -> (i32, i32) {
    %c0_i32 = arith.constant 0 : i32
    %c0_i32_0 = arith.constant 0 : i32
    %c0_i32_1 = arith.constant 0 : i32
    return %c0_i32, %c0_i32_0 : i32, i32
  }
  func.func @transform_5(%arg0: i32) -> (i32, i32) {
    %c0_i32 = arith.constant 0 : i32
    %c0_i32_0 = arith.constant 0 : i32
    %c0_i32_1 = arith.constant 0 : i32
    return %c0_i32, %c0_i32_0 : i32, i32
  }
  func.func @transform_6(%arg0: i32) -> (i32, i32) {
    %c0_i32 = arith.constant 0 : i32
    %c0_i32_0 = arith.constant 0 : i32
    %c0_i32_1 = arith.constant 0 : i32
    return %c0_i32, %c0_i32_0 : i32, i32
  }
  func.func @transform_7(%arg0: i32) -> (i32, i32) {
    %c0_i32 = arith.constant 0 : i32
    %c0_i32_0 = arith.constant 0 : i32
    return %arg0, %c0_i32 : i32, i32
  }
}

</mosaic_0001>

<llo_original>
// kernel: tpu_custom_call.1
$region0: #{tpu_custom_call.1}
  #allocation0 [shape = 'u32[]', space=smem, size = 0x4, offset = 0x4, fixed_abs, tag = 'smem constant byte address 0x4 - core index']
  #allocation1 [shape = 'u32[144,128]{1,0:T(1,128)}', space=vmem, size = 0x12000, scoped, tag = 'internal scratch']
  %s0 = inlined_call_operand.vmem [shape: f32[8,32], index: 0, kind: input, shape index: {}]
  %s1 = inlined_call_operand.vmem [shape: f32[32,64], index: 1, kind: input, shape index: {}]
  %s2 = inlined_call_operand.vmem [shape: f32[1,64], index: 2, kind: input, shape index: {}]
  %s3 = inlined_call_operand.vmem [shape: f32[64,48], index: 3, kind: input, shape index: {}]
  %s4 = inlined_call_operand.vmem [shape: f32[1,48], index: 4, kind: input, shape index: {}]
  %s5 = inlined_call_operand.vmem [shape: f32[48,16], index: 5, kind: input, shape index: {}]
  %s6 = inlined_call_operand.vmem [shape: f32[1,16], index: 6, kind: input, shape index: {}]
  %s7 = inlined_call_operand.hbm [shape: f32[8,16], index: 7, kind: output, shape index: {}]
  %s8 = sld [smem:[#allocation0]]
  $region38: #{tpu_custom_call.1} parent=0
    _
  %s10 = ssub.s32 1, %s8
  %s11 = scalar_select 0, %s10, %s8
  $region1: #{tpu_custom_call.1} parent=0
    #allocation2 [shape = 'u8[4096]{0}', space=vmem, size = 0x1000, scoped, tag = 'output window, operand 0, single buffered']
    #allocation3 [shape = 's32[1]{0}', space=sflag, size = 0x4, scoped, tag = 'scoped memory for tpu_custom_call.1']
    %12 = vsyncpa [#allocation3], 0
    // Predicated region
    $region2: #{tpu_custom_call.1} parent=1 // pred_check
      _
    $region3: #{tpu_custom_call.1} parent=1 // pred_check_branch
      %14 = sbr.rel (0) target = $region5
    $region4: #{tpu_custom_call.1} parent=1 // pred_region
      _
    $region5: #{tpu_custom_call.1} parent=1 // pred_fallthru
      _
    // Predicated region
    $region6: #{tpu_custom_call.1} parent=1 // pred_check
      _
    $region7: #{tpu_custom_call.1} parent=1 // pred_check_branch
      %16 = sbr.rel (0) target = $region9
    $region8: #{tpu_custom_call.1} parent=1 // pred_region
      _
    $region9: #{tpu_custom_call.1} parent=1 // pred_fallthru
      _
    // Predicated region
    $region10: #{tpu_custom_call.1} parent=1 // pred_check
      _
    $region11: #{tpu_custom_call.1} parent=1 // pred_check_branch
      %18 = sbr.rel (0) target = $region13
    $region12: #{tpu_custom_call.1} parent=1 // pred_region
      _
    $region13: #{tpu_custom_call.1} parent=1 // pred_fallthru
      _
    // Predicated region
    $region14: #{tpu_custom_call.1} parent=1 // pred_check
      _
    $region15: #{tpu_custom_call.1} parent=1 // pred_check_branch
      %20 = sbr.rel (0) target = $region17
    $region16: #{tpu_custom_call.1} parent=1 // pred_region
      _
    $region17: #{tpu_custom_call.1} parent=1 // pred_fallthru
      _
    // Predicated region
    $region18: #{tpu_custom_call.1} parent=1 // pred_check
      _
    $region19: #{tpu_custom_call.1} parent=1 // pred_check_branch
      %22 = sbr.rel (0) target = $region21
    $region20: #{tpu_custom_call.1} parent=1 // pred_region
      _
    $region21: #{tpu_custom_call.1} parent=1 // pred_fallthru
      _
    // Predicated region
    $region22: #{tpu_custom_call.1} parent=1 // pred_check
      _
    $region23: #{tpu_custom_call.1} parent=1 // pred_check_branch
      %24 = sbr.rel (0) target = $region25
    $region24: #{tpu_custom_call.1} parent=1 // pred_region
      _
    $region25: #{tpu_custom_call.1} parent=1 // pred_fallthru
      _
    // Predicated region
    $region26: #{tpu_custom_call.1} parent=1 // pred_check
      _
    $region27: #{tpu_custom_call.1} parent=1 // pred_check_branch
      %26 = sbr.rel (0) target = $region29
    $region28: #{tpu_custom_call.1} parent=1 // pred_region
      _
    $region29: #{tpu_custom_call.1} parent=1 // pred_fallthru
      _
    %v27 = vld [vmem:[%s0] sm:$0xff]
    %v28 = vld [vmem:[%s1] sm:$0xff]
    %v29 = vld [vmem:[%s1 + $0x8] sm:$0xff]
    %v30 = vld [vmem:[%s1 + $0x10] sm:$0xff]
    %v31 = vld [vmem:[%s1 + $0x18] sm:$0xff]
    %v32 = vld [vmem:[%s2] sm:$0x1]
    %v34 = vlaneseq
    %v35 = vshrl.u32 %v34, 7
    %v36 = vsub.s32 0, %v35
    %v37 = vrot.slane %v32, %v36
    %vm39 = vcmask 261120
    %v41 = vsel %vm39, %v27, 0
    %43 = vmatprep.subr.mxu0 0.0
    %44 = vmatpush1.msra.mxu0 %v28
    %45 = vmatprep.subr.mxu0 0.0
    %46 = vmatpush1.msra.mxu0 %v29
    %47 = vmatprep.subr.mxu0 0.0
    %48 = vmatpush1.msra.mxu0 %v30
    %49 = vmatprep.subr.mxu0 0.0
    %50 = vmatpush1.msra.mxu0 %v31
    %51 = vmatprep.subr.mxu0 0.0
    %52 = vmatpush1.msra.mxu0 0.0
    %53 = vmatprep.subr.mxu0 0.0
    %54 = vmatpush1.msra.mxu0 0.0
    %55 = vmatprep.subr.mxu0 0.0
    %56 = vmatpush1.msra.mxu0 0.0
    %57 = vmatprep.subr.mxu0 0.0
    %58 = vmatpush1.msra.mxu0 0.0
    %59 = vmatprep.subr.mxu0 0.0
    %60 = vmatpush1.msra.mxu0 0.0
    %61 = vmatprep.subr.mxu0 0.0
    %62 = vmatpush1.msra.mxu0 0.0
    %63 = vmatprep.subr.mxu0 0.0
    %64 = vmatpush1.msra.mxu0 0.0
    %65 = vmatprep.subr.mxu0 0.0
    %66 = vmatpush1.msra.mxu0 0.0
    %67 = vmatprep.subr.mxu0 0.0
    %68 = vmatpush1.msra.mxu0 0.0
    %69 = vmatprep.subr.mxu0 0.0
    %70 = vmatpush1.msra.mxu0 0.0
    %71 = vmatprep.subr.mxu0 0.0
    %72 = vmatpush1.msra.mxu0 0.0
    %73 = vmatprep.subr.mxu0 0.0
    %74 = vmatpush1.msra.mxu0 0.0
    %75 = vmatprep.subr.mxu0 0.0
    %76 = vmatpush1.msra.mxu0 0.0
    %77 = vmatprep.subr.mxu0 0.0
    %78 = vmatpush1.msra.mxu0 0.0
    %79 = vmatprep.subr.mxu0 0.0
    %80 = vmatpush1.msra.mxu0 0.0
    %81 = vmatprep.subr.mxu0 0.0
    %82 = vmatpush1.msra.mxu0 0.0
    %83 = vmatprep.subr.mxu0 0.0
    %84 = vmatpush1.msra.mxu0 0.0
    %85 = vmatprep.subr.mxu0 0.0
    %86 = vmatpush1.msra.mxu0 0.0
    %87 = vmatprep.subr.mxu0 0.0
    %88 = vmatpush1.msra.mxu0 0.0
    %89 = vmatprep.subr.mxu0 0.0
    %90 = vmatpush1.msra.mxu0 0.0
    %91 = vmatprep.subr.mxu0 0.0
    %92 = vmatpush1.msra.mxu0 0.0
    %93 = vmatprep.subr.mxu0 0.0
    %94 = vmatpush1.msra.mxu0 0.0
    %95 = vmatprep.subr.mxu0 0.0
    %96 = vmatpush1.msra.mxu0 0.0
    %97 = vmatprep.subr.mxu0 0.0
    %98 = vmatpush1.msra.mxu0 0.0
    %99 = vmatprep.subr.mxu0 0.0
    %100 = vmatpush1.msra.mxu0 0.0
    %101 = vmatprep.subr.mxu0 0.0
    %102 = vmatpush1.msra.mxu0 0.0
    %103 = vmatprep.subr.mxu0 0.0
    %104 = vmatpush1.msra.mxu0 0.0
    %105 = vmatprep.subr.mxu0 0.0
    %106 = vmatpush1.msra.mxu0 0.0
    %107 = vmatprep.mubr.f32.mxu0 0.0
    %108 = vmatmul.mubr.f32.gmra.mrb[0].mxu0 %v41
    %v109 = vpop.f32.mrb[0].mxu0
    %v110 = vadd.f32 %v37, %v109
    %v111 = vpop.f32.mrb[0].mxu0
    %112 = vdwg.mxu0
    %v113 = vmul.f32 %v110, 0.5
    %v114 = vmul.f32 %v110, 0.70710677
    %v115 = verf.f32.pop %v114
    %v116 = vadd.f32 %v115, 1.0
    %v117 = vmul.f32 %v113, %v116
    %v118 = vld [vmem:[%s3] sm:$0xff]
    %v119 = vld [vmem:[%s3 + $0x8] sm:$0xff]
    %v120 = vld [vmem:[%s3 + $0x10] sm:$0xff]
    %v121 = vld [vmem:[%s3 + $0x18] sm:$0xff]
    %v122 = vld [vmem:[%s3 + $0x20] sm:$0xff]
    %v123 = vld [vmem:[%s3 + $0x28] sm:$0xff]
    %v124 = vld [vmem:[%s3 + $0x30] sm:$0xff]
    %v125 = vld [vmem:[%s3 + $0x38] sm:$0xff]
    %v126 = vld [vmem:[%s4] sm:$0x1]
    %v128 = vlaneseq
    %v129 = vshrl.u32 %v128, 7
    %v130 = vsub.s32 0, %v129
    %v131 = vrot.slane %v126, %v130
    %vm133 = vcmask 523264
    %v135 = vsel %vm133, %v117, 0
    %137 = vmatprep.subr.mxu0 0.0
    %138 = vmatpush1.msra.mxu0 %v118
    %139 = vmatprep.subr.mxu0 0.0
    %140 = vmatpush1.msra.mxu0 %v119
    %141 = vmatprep.subr.mxu0 0.0
    %142 = vmatpush1.msra.mxu0 %v120
    %143 = vmatprep.subr.mxu0 0.0
    %144 = vmatpush1.msra.mxu0 %v121
    %145 = vmatprep.subr.mxu0 0.0
    %146 = vmatpush1.msra.mxu0 %v122
    %147 = vmatprep.subr.mxu0 0.0
    %148 = vmatpush1.msra.mxu0 %v123
    %149 = vmatprep.subr.mxu0 0.0
    %150 = vmatpush1.msra.mxu0 %v124
    %151 = vmatprep.subr.mxu0 0.0
    %152 = vmatpush1.msra.mxu0 %v125
    %153 = vmatprep.subr.mxu0 0.0
    %154 = vmatpush1.msra.mxu0 0.0
    %155 = vmatprep.subr.mxu0 0.0
    %156 = vmatpush1.msra.mxu0 0.0
    %157 = vmatprep.subr.mxu0 0.0
    %158 = vmatpush1.msra.mxu0 0.0
    %159 = vmatprep.subr.mxu0 0.0
    %160 = vmatpush1.msra.mxu0 0.0
    %161 = vmatprep.subr.mxu0 0.0
    %162 = vmatpush1.msra.mxu0 0.0
    %163 = vmatprep.subr.mxu0 0.0
    %164 = vmatpush1.msra.mxu0 0.0
    %165 = vmatprep.subr.mxu0 0.0
    %166 = vmatpush1.msra.mxu0 0.0
    %167 = vmatprep.subr.mxu0 0.0
    %168 = vmatpush1.msra.mxu0 0.0
    %169 = vmatprep.subr.mxu0 0.0
    %170 = vmatpush1.msra.mxu0 0.0
    %171 = vmatprep.subr.mxu0 0.0
    %172 = vmatpush1.msra.mxu0 0.0
    %173 = vmatprep.subr.mxu0 0.0
    %174 = vmatpush1.msra.mxu0 0.0
    %175 = vmatprep.subr.mxu0 0.0
    %176 = vmatpush1.msra.mxu0 0.0
    %177 = vmatprep.subr.mxu0 0.0
    %178 = vmatpush1.msra.mxu0 0.0
    %179 = vmatprep.subr.mxu0 0.0
    %180 = vmatpush1.msra.mxu0 0.0
    %181 = vmatprep.subr.mxu0 0.0
    %182 = vmatpush1.msra.mxu0 0.0
    %183 = vmatprep.subr.mxu0 0.0
    %184 = vmatpush1.msra.mxu0 0.0
    %185 = vmatprep.subr.mxu0 0.0
    %186 = vmatpush1.msra.mxu0 0.0
    %187 = vmatprep.subr.mxu0 0.0
    %188 = vmatpush1.msra.mxu0 0.0
    %189 = vmatprep.subr.mxu0 0.0
    %190 = vmatpush1.msra.mxu0 0.0
    %191 = vmatprep.subr.mxu0 0.0
    %192 = vmatpush1.msra.mxu0 0.0
    %193 = vmatprep.subr.mxu0 0.0
    %194 = vmatpush1.msra.mxu0 0.0
    %195 = vmatprep.subr.mxu0 0.0
    %196 = vmatpush1.msra.mxu0 0.0
    %197 = vmatprep.subr.mxu0 0.0
    %198 = vmatpush1.msra.mxu0 0.0
    %199 = vmatprep.subr.mxu0 0.0
    %200 = vmatpush1.msra.mxu0 0.0
    %201 = vmatprep.mubr.f32.mxu0 0.0
    %202 = vmatmul.mubr.f32.gmra.mrb[0].mxu0 %v135
    %v203 = vpop.f32.mrb[0].mxu0
    %v204 = vadd.f32 %v131, %v203
    %v205 = vpop.f32.mrb[0].mxu0
    %206 = vdwg.mxu0
    %v207 = vmul.f32 %v204, 0.5
    %v208 = vmul.f32 %v204, 0.70710677
    %v209 = verf.f32.pop %v208
    %v210 = vadd.f32 %v209, 1.0
    %v211 = vmul.f32 %v207, %v210
    %v212 = vld [vmem:[%s5] sm:$0xff]
    %v213 = vld [vmem:[%s5 + $0x8] sm:$0xff]
    %v214 = vld [vmem:[%s5 + $0x10] sm:$0xff]
    %v215 = vld [vmem:[%s5 + $0x18] sm:$0xff]
    %v216 = vld [vmem:[%s5 + $0x20] sm:$0xff]
    %v217 = vld [vmem:[%s5 + $0x28] sm:$0xff]
    %v218 = vld [vmem:[%s6] sm:$0x1]
    %v220 = vlaneseq
    %v221 = vshrl.u32 %v220, 7
    %v222 = vsub.s32 0, %v221
    %v223 = vrot.slane %v218, %v222
    %vm225 = vcmask 392192
    %v227 = vsel %vm225, %v211, 0
    %229 = vmatprep.subr.mxu0 0.0
    %230 = vmatpush1.msra.mxu0 %v212
    %231 = vmatprep.subr.mxu0 0.0
    %232 = vmatpush1.msra.mxu0 %v213
    %233 = vmatprep.subr.mxu0 0.0
    %234 = vmatpush1.msra.mxu0 %v214
    %235 = vmatprep.subr.mxu0 0.0
    %236 = vmatpush1.msra.mxu0 %v215
    %237 = vmatprep.subr.mxu0 0.0
    %238 = vmatpush1.msra.mxu0 %v216
    %239 = vmatprep.subr.mxu0 0.0
    %240 = vmatpush1.msra.mxu0 %v217
    %241 = vmatprep.subr.mxu0 0.0
    %242 = vmatpush1.msra.mxu0 0.0
    %243 = vmatprep.subr.mxu0 0.0
    %244 = vmatpush1.msra.mxu0 0.0
    %245 = vmatprep.subr.mxu0 0.0
    %246 = vmatpush1.msra.mxu0 0.0
    %247 = vmatprep.subr.mxu0 0.0
    %248 = vmatpush1.msra.mxu0 0.0
    %249 = vmatprep.subr.mxu0 0.0
    %250 = vmatpush1.msra.mxu0 0.0
    %251 = vmatprep.subr.mxu0 0.0
    %252 = vmatpush1.msra.mxu0 0.0
    %253 = vmatprep.subr.mxu0 0.0
    %254 = vmatpush1.msra.mxu0 0.0
    %255 = vmatprep.subr.mxu0 0.0
    %256 = vmatpush1.msra.mxu0 0.0
    %257 = vmatprep.subr.mxu0 0.0
    %258 = vmatpush1.msra.mxu0 0.0
    %259 = vmatprep.subr.mxu0 0.0
    %260 = vmatpush1.msra.mxu0 0.0
    %261 = vmatprep.subr.mxu0 0.0
    %262 = vmatpush1.msra.mxu0 0.0
    %263 = vmatprep.subr.mxu0 0.0
    %264 = vmatpush1.msra.mxu0 0.0
    %265 = vmatprep.subr.mxu0 0.0
    %266 = vmatpush1.msra.mxu0 0.0
    %267 = vmatprep.subr.mxu0 0.0
    %268 = vmatpush1.msra.mxu0 0.0
    %269 = vmatprep.subr.mxu0 0.0
    %270 = vmatpush1.msra.mxu0 0.0
    %271 = vmatprep.subr.mxu0 0.0
    %272 = vmatpush1.msra.mxu0 0.0
    %273 = vmatprep.subr.mxu0 0.0
    %274 = vmatpush1.msra.mxu0 0.0
    %275 = vmatprep.subr.mxu0 0.0
    %276 = vmatpush1.msra.mxu0 0.0
    %277 = vmatprep.subr.mxu0 0.0
    %278 = vmatpush1.msra.mxu0 0.0
    %279 = vmatprep.subr.mxu0 0.0
    %280 = vmatpush1.msra.mxu0 0.0
    %281 = vmatprep.subr.mxu0 0.0
    %282 = vmatpush1.msra.mxu0 0.0
    %283 = vmatprep.subr.mxu0 0.0
    %284 = vmatpush1.msra.mxu0 0.0
    %285 = vmatprep.subr.mxu0 0.0
    %286 = vmatpush1.msra.mxu0 0.0
    %287 = vmatprep.subr.mxu0 0.0
    %288 = vmatpush1.msra.mxu0 0.0
    %289 = vmatprep.subr.mxu0 0.0
    %290 = vmatpush1.msra.mxu0 0.0
    %291 = vmatprep.subr.mxu0 0.0
    %292 = vmatpush1.msra.mxu0 0.0
    %293 = vmatprep.mubr.f32.mxu0 0.0
    %294 = vmatmul.mubr.f32.gmra.mrb[0].mxu0 %v227
    %v295 = vpop.f32.mrb[0].mxu0
    %v296 = vadd.f32 %v223, %v295
    %v297 = vpop.f32.mrb[0].mxu0
    %298 = vdwg.mxu0
    %vm299 = vcmask 130048
    %300 = vst.msk [vmem:[#allocation2] sm:$0xff] %vm299, %v296
    // Predicated region
    $region30: #{tpu_custom_call.1} parent=1 // pred_check
      _
    $region31: #{tpu_custom_call.1} parent=1 // pred_check_branch
      %302 = sbr.rel (0) target = $region33
    $region32: #{tpu_custom_call.1} parent=1 // pred_region
      %s304 = ssub.s32 128, 128
      %305 = vsyncadd [#allocation3], %s304
      %s307 = sshll.u32 [#allocation2], 4
      %s308 = int_to_ptr.vmem [resolvable:$true] %s307
      %310 = dma.vmem_to_hbm [thread:$0]  %s308, 128, %s7, [#allocation3]
    $region33: #{tpu_custom_call.1} parent=1 // pred_fallthru
      _
    // Predicated region
    $region34: #{tpu_custom_call.1} parent=1 // pred_check
      _
    $region35: #{tpu_custom_call.1} parent=1 // pred_check_branch
      %312 = sbr.rel (0) target = $region37
    $region36: #{tpu_custom_call.1} parent=1 // pred_region
      %313 = dma.done [#allocation3], 128
    $region37: #{tpu_custom_call.1} parent=1 // pred_fallthru
      _
    %314 = vsyncpa [#allocation3], 1

</llo_original>
